<compile_context>
chip_gen: v5e
topology: v5e:2x2
jax: 0.10.0
libtpu: 0.0.40
codegen_flags: <defaults>
</compile_context>

<pallas_src>
import jax
import jax.numpy as jnp
from jax.experimental import pallas as pl
from jax.experimental.pallas import tpu as pltpu


def lstm_fc_kernel(x_ref,      # (T*Bp, I)  time-major flattened input rows (batch padded)
                   wih_ref,    # (I, 4H)    fused input weights  (gate order i|f|g|o)
                   whh_ref,    # (H, 4H)    fused recurrent weights
                   b_ref,      # (1, 4H)    fused bias (b_ih + b_hh)
                   wfc_ref,    # (H, O)     fc.weight.T
                   bfc_ref,    # (1, O)     fc.bias
                   out_ref):   # (Bp, O)
    TB, _ = x_ref.shape
    Bp, O = out_ref.shape
    H = whh_ref.shape[0]
    T = TB // Bp

    # Loop-invariant loads.
    whh = whh_ref[...]                                        # (H, 4H)

    # Input projection for ALL timesteps in one MXU matmul (off the serial
    # recurrence path), bias folded in -> lane-dense (T*Bp, 4H) slab.
    proj = (jnp.dot(x_ref[...], wih_ref[...],
                    preferred_element_type=jnp.float32)
            + b_ref[...])                                     # (T*Bp, 4H)

    # Lane mask selecting the g-gate lanes [2H, 3H) of the fused 4H axis
    # (g uses tanh; i, f, o use sigmoid).  Hoisted out of the loop.
    lane = jax.lax.broadcasted_iota(jnp.int32, (Bp, 4 * H), 1)
    is_g = (lane >= 2 * H) & (lane < 3 * H)

    # Serial recurrence, fully unrolled (static T). Only the single h @ W_hh
    # matmul + 2 EUP ops sit on the per-step dependency chain.
    h = jnp.zeros((Bp, H), jnp.float32)
    c = jnp.zeros((Bp, H), jnp.float32)
    for t in range(T):
        r = t * Bp                                            # static, multiple of 8
        gates = proj[r:r + Bp] + jnp.dot(h, whh,
                                         preferred_element_type=jnp.float32)  # (Bp, 4H)
        sig = jax.nn.sigmoid(gates)
        tnh = jnp.tanh(gates)
        act = jnp.where(is_g, tnh, sig)                       # VPU select
        i_g = act[:, 0 * H:1 * H]
        f_g = act[:, 1 * H:2 * H]
        g_g = act[:, 2 * H:3 * H]
        o_g = act[:, 3 * H:4 * H]
        c = f_g * c + i_g * g_g
        h = o_g * jnp.tanh(c)

    # fc applied to the last timestep's hidden state.
    out_ref[...] = (jnp.dot(h, wfc_ref[...], preferred_element_type=jnp.float32)
                    + bfc_ref[...]).astype(out_ref.dtype)


def prepare_stock_model_params(w_ih, w_hh, b_ih, b_hh, w_fc, b_fc):
    """One-time weight preprocessing (kept OUT of the per-call forward path).

    PyTorch layouts: w_ih (4H, I), w_hh (4H, H), b_* (4H,), w_fc (O, H),
    b_fc (O,), gate order i|f|g|o along the 4H axis.
    """
    wih_all = jnp.asarray(w_ih, jnp.float32).T               # (I, 4H)
    whh_all = jnp.asarray(w_hh, jnp.float32).T               # (H, 4H)
    b_all = (jnp.asarray(b_ih, jnp.float32)
             + jnp.asarray(b_hh, jnp.float32))[None, :]      # (1, 4H)
    wfc_t = jnp.asarray(w_fc, jnp.float32).T                 # (H, O)
    bfc = jnp.asarray(b_fc, jnp.float32)[None, :]            # (1, O)
    return wih_all, whh_all, b_all, wfc_t, bfc


@jax.jit
def stock_model_forward(x_btI, wih_all, whh_all, b_all, wfc_t, bfc):
    """x_btI: (B, T, I) float32 (PyTorch batch_first layout). Weights pre-fused."""
    B, T, I = x_btI.shape
    O = wfc_t.shape[1]

    # Pad batch up to the f32 sublane count so each per-step proj slice is
    # sublane-aligned (padding is free: (B,H) already occupies full vregs).
    Bp = max(8, ((B + 7) // 8) * 8)

    # Time-major rows so each per-step slice of the precomputed projection is
    # a contiguous (Bp, 4H) block.  This is the only per-call x handling.
    x_tm = jnp.transpose(x_btI, (1, 0, 2))                    # (T, B, I)
    x_tm = jnp.pad(x_tm, ((0, 0), (0, Bp - B), (0, 0)))       # (T, Bp, I)
    x_tm = x_tm.reshape(T * Bp, I)                            # (T*Bp, I)

    vmem = pl.BlockSpec(memory_space=pltpu.MemorySpace.VMEM)
    out_p = pl.pallas_call(
        lstm_fc_kernel,
        out_shape=jax.ShapeDtypeStruct((Bp, O), jnp.float32),
        in_specs=[vmem] * 6,
        out_specs=vmem,
    )(x_tm, wih_all, whh_all, b_all, wfc_t, bfc)
    return out_p[:B]                                          # drop padded rows


def lstm_fc_reference(x_btI, w_ih, w_hh, b_ih, b_hh, w_fc, b_fc, hidden_size):
    """Pure-JAX reference matching torch.nn.LSTM + Linear semantics."""
    B, T, I = x_btI.shape
    H = hidden_size
    h = jnp.zeros((B, H), jnp.float32)
    c = jnp.zeros((B, H), jnp.float32)
    for t in range(T):
        gates = x_btI[:, t, :] @ w_ih.T + b_ih + h @ w_hh.T + b_hh
        i_g = jax.nn.sigmoid(gates[:, 0 * H:1 * H])
        f_g = jax.nn.sigmoid(gates[:, 1 * H:2 * H])
        g_g = jnp.tanh(gates[:, 2 * H:3 * H])
        o_g = jax.nn.sigmoid(gates[:, 3 * H:4 * H])
        c = f_g * c + i_g * g_g
        h = o_g * jnp.tanh(c)
    return h @ w_fc.T + b_fc


if __name__ == "__main__":
    # Small shapes: batch=2, seq=8, input_size=4, hidden=32, output=1
    B, T, I, H, O = 2, 8, 4, 32, 1

    key = jax.random.PRNGKey(0)
    ks = jax.random.split(key, 7)
    # Deterministic init mimicking PyTorch's U(-1/sqrt(H), 1/sqrt(H))
    bound = 1.0 / jnp.sqrt(jnp.float32(H))
    w_ih = jax.random.uniform(ks[0], (4 * H, I), jnp.float32, -bound, bound)
    w_hh = jax.random.uniform(ks[1], (4 * H, H), jnp.float32, -bound, bound)
    b_ih = jax.random.uniform(ks[2], (4 * H,), jnp.float32, -bound, bound)
    b_hh = jax.random.uniform(ks[3], (4 * H,), jnp.float32, -bound, bound)
    w_fc = jax.random.uniform(ks[4], (O, H), jnp.float32, -bound, bound)
    b_fc = jax.random.uniform(ks[5], (O,), jnp.float32, -bound, bound)
    x = jax.random.normal(ks[6], (B, T, I), jnp.float32)

    # One-time weight prep (model init), not on the per-call path.
    params = prepare_stock_model_params(w_ih, w_hh, b_ih, b_hh, w_fc, b_fc)
    params = jax.tree_util.tree_map(jax.block_until_ready, params)

    out = stock_model_forward(x, *params)
    out = jax.block_until_ready(out)

    ref = lstm_fc_reference(x, w_ih, w_hh, b_ih, b_hh, w_fc, b_fc, H)
    assert out.shape == (B, O)
    assert jnp.allclose(out, ref, atol=2e-3, rtol=2e-3), (out, ref)

    print("KERNEL_OK")
</pallas_src>

<mosaic_0001>
module attributes {stable_mosaic.version = 11 : i64} {
  func.func @lstm_fc_kernel(%arg0: memref<64x4xf32, #tpu.memory_space<vmem>>, %arg1: memref<4x128xf32, #tpu.memory_space<vmem>>, %arg2: memref<32x128xf32, #tpu.memory_space<vmem>>, %arg3: memref<1x128xf32, #tpu.memory_space<vmem>>, %arg4: memref<32x1xf32, #tpu.memory_space<vmem>>, %arg5: memref<1x1xf32, #tpu.memory_space<vmem>>, %arg6: memref<8x1xf32, #tpu.memory_space<vmem>>) attributes {dimension_semantics = [], scalar_prefetch = 0 : i64, scratch_operands = 0 : i64, tpu.core_type = #tpu.core_type<tc>} {
    %c0 = arith.constant 0 : index
    %c0_0 = arith.constant 0 : index
    %0 = vector.load %arg2[%c0, %c0_0] : memref<32x128xf32, #tpu.memory_space<vmem>>, vector<32x128xf32>
    %c0_1 = arith.constant 0 : index
    %c0_2 = arith.constant 0 : index
    %1 = vector.load %arg0[%c0_1, %c0_2] : memref<64x4xf32, #tpu.memory_space<vmem>>, vector<64x4xf32>
    %c0_3 = arith.constant 0 : index
    %c0_4 = arith.constant 0 : index
    %2 = vector.load %arg1[%c0_3, %c0_4] : memref<4x128xf32, #tpu.memory_space<vmem>>, vector<4x128xf32>
    %cst = arith.constant dense<0.000000e+00> : vector<64x128xf32>
    %3 = tpu.matmul %1, %2, %cst {dimension_numbers = #tpu.dot_dimension_numbers<[1], [0], [0], [1], [0, 0, 1, 1], [], []>} : vector<64x4xf32>, vector<4x128xf32>, vector<64x128xf32> -> vector<64x128xf32>
    %c0_5 = arith.constant 0 : index
    %c0_6 = arith.constant 0 : index
    %4 = vector.load %arg3[%c0_5, %c0_6] : memref<1x128xf32, #tpu.memory_space<vmem>>, vector<1x128xf32>
    %5 = vector.broadcast %4 : vector<1x128xf32> to vector<64x128xf32>
    %6 = arith.addf %3, %5 : vector<64x128xf32>
    %7 = tpu.iota {dimensions = array<i32: 1>} : vector<8x128xi32>
    %c64_i32 = arith.constant 64 : i32
    %8 = vector.broadcast %c64_i32 : i32 to vector<8x128xi32>
    %9 = arith.cmpi sge, %7, %8 : vector<8x128xi32>
    %c96_i32 = arith.constant 96 : i32
    %10 = vector.broadcast %c96_i32 : i32 to vector<8x128xi32>
    %11 = arith.cmpi slt, %7, %10 : vector<8x128xi32>
    %12 = arith.andi %9, %11 : vector<8x128xi1>
    %cst_7 = arith.constant 0.000000e+00 : f32
    %13 = vector.broadcast %cst_7 : f32 to vector<8x32xf32>
    %cst_8 = arith.constant 0.000000e+00 : f32
    %14 = vector.broadcast %cst_8 : f32 to vector<8x32xf32>
    %15 = vector.extract_strided_slice %6 {offsets = [0, 0], sizes = [8, 128], strides = [1, 1]} : vector<64x128xf32> to vector<8x128xf32>
    %cst_9 = arith.constant dense<0.000000e+00> : vector<8x128xf32>
    %16 = tpu.matmul %13, %0, %cst_9 {dimension_numbers = #tpu.dot_dimension_numbers<[1], [0], [0], [1], [0, 0, 1, 1], [], []>} : vector<8x32xf32>, vector<32x128xf32>, vector<8x128xf32> -> vector<8x128xf32>
    %17 = arith.addf %15, %16 : vector<8x128xf32>
    %18 = arith.negf %17 : vector<8x128xf32>
    %19 = math.exp %18 : vector<8x128xf32>
    %cst_10 = arith.constant 1.000000e+00 : f32
    %20 = vector.broadcast %cst_10 : f32 to vector<8x128xf32>
    %21 = arith.addf %20, %19 : vector<8x128xf32>
    %22 = arith.divf %20, %21 : vector<8x128xf32>
    %23 = math.tanh %17 : vector<8x128xf32>
    %24 = arith.select %12, %23, %22 : vector<8x128xi1>, vector<8x128xf32>
    %25 = vector.extract_strided_slice %24 {offsets = [0, 0], sizes = [8, 32], strides = [1, 1]} : vector<8x128xf32> to vector<8x32xf32>
    %26 = vector.extract_strided_slice %24 {offsets = [0, 32], sizes = [8, 32], strides = [1, 1]} : vector<8x128xf32> to vector<8x32xf32>
    %27 = vector.extract_strided_slice %24 {offsets = [0, 64], sizes = [8, 32], strides = [1, 1]} : vector<8x128xf32> to vector<8x32xf32>
    %28 = vector.extract_strided_slice %24 {offsets = [0, 96], sizes = [8, 32], strides = [1, 1]} : vector<8x128xf32> to vector<8x32xf32>
    %29 = arith.mulf %26, %14 : vector<8x32xf32>
    %30 = arith.mulf %25, %27 : vector<8x32xf32>
    %31 = arith.addf %29, %30 : vector<8x32xf32>
    %32 = math.tanh %31 : vector<8x32xf32>
    %33 = arith.mulf %28, %32 : vector<8x32xf32>
    %34 = vector.extract_strided_slice %6 {offsets = [8, 0], sizes = [8, 128], strides = [1, 1]} : vector<64x128xf32> to vector<8x128xf32>
    %cst_11 = arith.constant dense<0.000000e+00> : vector<8x128xf32>
    %35 = tpu.matmul %33, %0, %cst_11 {dimension_numbers = #tpu.dot_dimension_numbers<[1], [0], [0], [1], [0, 0, 1, 1], [], []>} : vector<8x32xf32>, vector<32x128xf32>, vector<8x128xf32> -> vector<8x128xf32>
    %36 = arith.addf %34, %35 : vector<8x128xf32>
    %37 = arith.negf %36 : vector<8x128xf32>
    %38 = math.exp %37 : vector<8x128xf32>
    %cst_12 = arith.constant 1.000000e+00 : f32
    %39 = vector.broadcast %cst_12 : f32 to vector<8x128xf32>
    %40 = arith.addf %39, %38 : vector<8x128xf32>
    %41 = arith.divf %39, %40 : vector<8x128xf32>
    %42 = math.tanh %36 : vector<8x128xf32>
    %43 = arith.select %12, %42, %41 : vector<8x128xi1>, vector<8x128xf32>
    %44 = vector.extract_strided_slice %43 {offsets = [0, 0], sizes = [8, 32], strides = [1, 1]} : vector<8x128xf32> to vector<8x32xf32>
    %45 = vector.extract_strided_slice %43 {offsets = [0, 32], sizes = [8, 32], strides = [1, 1]} : vector<8x128xf32> to vector<8x32xf32>
    %46 = vector.extract_strided_slice %43 {offsets = [0, 64], sizes = [8, 32], strides = [1, 1]} : vector<8x128xf32> to vector<8x32xf32>
    %47 = vector.extract_strided_slice %43 {offsets = [0, 96], sizes = [8, 32], strides = [1, 1]} : vector<8x128xf32> to vector<8x32xf32>
    %48 = arith.mulf %45, %31 : vector<8x32xf32>
    %49 = arith.mulf %44, %46 : vector<8x32xf32>
    %50 = arith.addf %48, %49 : vector<8x32xf32>
    %51 = math.tanh %50 : vector<8x32xf32>
    %52 = arith.mulf %47, %51 : vector<8x32xf32>
    %53 = vector.extract_strided_slice %6 {offsets = [16, 0], sizes = [8, 128], strides = [1, 1]} : vector<64x128xf32> to vector<8x128xf32>
    %cst_13 = arith.constant dense<0.000000e+00> : vector<8x128xf32>
    %54 = tpu.matmul %52, %0, %cst_13 {dimension_numbers = #tpu.dot_dimension_numbers<[1], [0], [0], [1], [0, 0, 1, 1], [], []>} : vector<8x32xf32>, vector<32x128xf32>, vector<8x128xf32> -> vector<8x128xf32>
    %55 = arith.addf %53, %54 : vector<8x128xf32>
    %56 = arith.negf %55 : vector<8x128xf32>
    %57 = math.exp %56 : vector<8x128xf32>
    %cst_14 = arith.constant 1.000000e+00 : f32
    %58 = vector.broadcast %cst_14 : f32 to vector<8x128xf32>
    %59 = arith.addf %58, %57 : vector<8x128xf32>
    %60 = arith.divf %58, %59 : vector<8x128xf32>
    %61 = math.tanh %55 : vector<8x128xf32>
    %62 = arith.select %12, %61, %60 : vector<8x128xi1>, vector<8x128xf32>
    %63 = vector.extract_strided_slice %62 {offsets = [0, 0], sizes = [8, 32], strides = [1, 1]} : vector<8x128xf32> to vector<8x32xf32>
    %64 = vector.extract_strided_slice %62 {offsets = [0, 32], sizes = [8, 32], strides = [1, 1]} : vector<8x128xf32> to vector<8x32xf32>
    %65 = vector.extract_strided_slice %62 {offsets = [0, 64], sizes = [8, 32], strides = [1, 1]} : vector<8x128xf32> to vector<8x32xf32>
    %66 = vector.extract_strided_slice %62 {offsets = [0, 96], sizes = [8, 32], strides = [1, 1]} : vector<8x128xf32> to vector<8x32xf32>
    %67 = arith.mulf %64, %50 : vector<8x32xf32>
    %68 = arith.mulf %63, %65 : vector<8x32xf32>
    %69 = arith.addf %67, %68 : vector<8x32xf32>
    %70 = math.tanh %69 : vector<8x32xf32>
    %71 = arith.mulf %66, %70 : vector<8x32xf32>
    %72 = vector.extract_strided_slice %6 {offsets = [24, 0], sizes = [8, 128], strides = [1, 1]} : vector<64x128xf32> to vector<8x128xf32>
    %cst_15 = arith.constant dense<0.000000e+00> : vector<8x128xf32>
    %73 = tpu.matmul %71, %0, %cst_15 {dimension_numbers = #tpu.dot_dimension_numbers<[1], [0], [0], [1], [0, 0, 1, 1], [], []>} : vector<8x32xf32>, vector<32x128xf32>, vector<8x128xf32> -> vector<8x128xf32>
    %74 = arith.addf %72, %73 : vector<8x128xf32>
    %75 = arith.negf %74 : vector<8x128xf32>
    %76 = math.exp %75 : vector<8x128xf32>
    %cst_16 = arith.constant 1.000000e+00 : f32
    %77 = vector.broadcast %cst_16 : f32 to vector<8x128xf32>
    %78 = arith.addf %77, %76 : vector<8x128xf32>
    %79 = arith.divf %77, %78 : vector<8x128xf32>
    %80 = math.tanh %74 : vector<8x128xf32>
    %81 = arith.select %12, %80, %79 : vector<8x128xi1>, vector<8x128xf32>
    %82 = vector.extract_strided_slice %81 {offsets = [0, 0], sizes = [8, 32], strides = [1, 1]} : vector<8x128xf32> to vector<8x32xf32>
    %83 = vector.extract_strided_slice %81 {offsets = [0, 32], sizes = [8, 32], strides = [1, 1]} : vector<8x128xf32> to vector<8x32xf32>
    %84 = vector.extract_strided_slice %81 {offsets = [0, 64], sizes = [8, 32], strides = [1, 1]} : vector<8x128xf32> to vector<8x32xf32>
    %85 = vector.extract_strided_slice %81 {offsets = [0, 96], sizes = [8, 32], strides = [1, 1]} : vector<8x128xf32> to vector<8x32xf32>
    %86 = arith.mulf %83, %69 : vector<8x32xf32>
    %87 = arith.mulf %82, %84 : vector<8x32xf32>
    %88 = arith.addf %86, %87 : vector<8x32xf32>
    %89 = math.tanh %88 : vector<8x32xf32>
    %90 = arith.mulf %85, %89 : vector<8x32xf32>
    %91 = vector.extract_strided_slice %6 {offsets = [32, 0], sizes = [8, 128], strides = [1, 1]} : vector<64x128xf32> to vector<8x128xf32>
    %cst_17 = arith.constant dense<0.000000e+00> : vector<8x128xf32>
    %92 = tpu.matmul %90, %0, %cst_17 {dimension_numbers = #tpu.dot_dimension_numbers<[1], [0], [0], [1], [0, 0, 1, 1], [], []>} : vector<8x32xf32>, vector<32x128xf32>, vector<8x128xf32> -> vector<8x128xf32>
    %93 = arith.addf %91, %92 : vector<8x128xf32>
    %94 = arith.negf %93 : vector<8x128xf32>
    %95 = math.exp %94 : vector<8x128xf32>
    %cst_18 = arith.constant 1.000000e+00 : f32
    %96 = vector.broadcast %cst_18 : f32 to vector<8x128xf32>
    %97 = arith.addf %96, %95 : vector<8x128xf32>
    %98 = arith.divf %96, %97 : vector<8x128xf32>
    %99 = math.tanh %93 : vector<8x128xf32>
    %100 = arith.select %12, %99, %98 : vector<8x128xi1>, vector<8x128xf32>
    %101 = vector.extract_strided_slice %100 {offsets = [0, 0], sizes = [8, 32], strides = [1, 1]} : vector<8x128xf32> to vector<8x32xf32>
    %102 = vector.extract_strided_slice %100 {offsets = [0, 32], sizes = [8, 32], strides = [1, 1]} : vector<8x128xf32> to vector<8x32xf32>
    %103 = vector.extract_strided_slice %100 {offsets = [0, 64], sizes = [8, 32], strides = [1, 1]} : vector<8x128xf32> to vector<8x32xf32>
    %104 = vector.extract_strided_slice %100 {offsets = [0, 96], sizes = [8, 32], strides = [1, 1]} : vector<8x128xf32> to vector<8x32xf32>
    %105 = arith.mulf %102, %88 : vector<8x32xf32>
    %106 = arith.mulf %101, %103 : vector<8x32xf32>
    %107 = arith.addf %105, %106 : vector<8x32xf32>
    %108 = math.tanh %107 : vector<8x32xf32>
    %109 = arith.mulf %104, %108 : vector<8x32xf32>
    %110 = vector.extract_strided_slice %6 {offsets = [40, 0], sizes = [8, 128], strides = [1, 1]} : vector<64x128xf32> to vector<8x128xf32>
    %cst_19 = arith.constant dense<0.000000e+00> : vector<8x128xf32>
    %111 = tpu.matmul %109, %0, %cst_19 {dimension_numbers = #tpu.dot_dimension_numbers<[1], [0], [0], [1], [0, 0, 1, 1], [], []>} : vector<8x32xf32>, vector<32x128xf32>, vector<8x128xf32> -> vector<8x128xf32>
    %112 = arith.addf %110, %111 : vector<8x128xf32>
    %113 = arith.negf %112 : vector<8x128xf32>
    %114 = math.exp %113 : vector<8x128xf32>
    %cst_20 = arith.constant 1.000000e+00 : f32
    %115 = vector.broadcast %cst_20 : f32 to vector<8x128xf32>
    %116 = arith.addf %115, %114 : vector<8x128xf32>
    %117 = arith.divf %115, %116 : vector<8x128xf32>
    %118 = math.tanh %112 : vector<8x128xf32>
    %119 = arith.select %12, %118, %117 : vector<8x128xi1>, vector<8x128xf32>
    %120 = vector.extract_strided_slice %119 {offsets = [0, 0], sizes = [8, 32], strides = [1, 1]} : vector<8x128xf32> to vector<8x32xf32>
    %121 = vector.extract_strided_slice %119 {offsets = [0, 32], sizes = [8, 32], strides = [1, 1]} : vector<8x128xf32> to vector<8x32xf32>
    %122 = vector.extract_strided_slice %119 {offsets = [0, 64], sizes = [8, 32], strides = [1, 1]} : vector<8x128xf32> to vector<8x32xf32>
    %123 = vector.extract_strided_slice %119 {offsets = [0, 96], sizes = [8, 32], strides = [1, 1]} : vector<8x128xf32> to vector<8x32xf32>
    %124 = arith.mulf %121, %107 : vector<8x32xf32>
    %125 = arith.mulf %120, %122 : vector<8x32xf32>
    %126 = arith.addf %124, %125 : vector<8x32xf32>
    %127 = math.tanh %126 : vector<8x32xf32>
    %128 = arith.mulf %123, %127 : vector<8x32xf32>
    %129 = vector.extract_strided_slice %6 {offsets = [48, 0], sizes = [8, 128], strides = [1, 1]} : vector<64x128xf32> to vector<8x128xf32>
    %cst_21 = arith.constant dense<0.000000e+00> : vector<8x128xf32>
    %130 = tpu.matmul %128, %0, %cst_21 {dimension_numbers = #tpu.dot_dimension_numbers<[1], [0], [0], [1], [0, 0, 1, 1], [], []>} : vector<8x32xf32>, vector<32x128xf32>, vector<8x128xf32> -> vector<8x128xf32>
    %131 = arith.addf %129, %130 : vector<8x128xf32>
    %132 = arith.negf %131 : vector<8x128xf32>
    %133 = math.exp %132 : vector<8x128xf32>
    %cst_22 = arith.constant 1.000000e+00 : f32
    %134 = vector.broadcast %cst_22 : f32 to vector<8x128xf32>
    %135 = arith.addf %134, %133 : vector<8x128xf32>
    %136 = arith.divf %134, %135 : vector<8x128xf32>
    %137 = math.tanh %131 : vector<8x128xf32>
    %138 = arith.select %12, %137, %136 : vector<8x128xi1>, vector<8x128xf32>
    %139 = vector.extract_strided_slice %138 {offsets = [0, 0], sizes = [8, 32], strides = [1, 1]} : vector<8x128xf32> to vector<8x32xf32>
    %140 = vector.extract_strided_slice %138 {offsets = [0, 32], sizes = [8, 32], strides = [1, 1]} : vector<8x128xf32> to vector<8x32xf32>
    %141 = vector.extract_strided_slice %138 {offsets = [0, 64], sizes = [8, 32], strides = [1, 1]} : vector<8x128xf32> to vector<8x32xf32>
    %142 = vector.extract_strided_slice %138 {offsets = [0, 96], sizes = [8, 32], strides = [1, 1]} : vector<8x128xf32> to vector<8x32xf32>
    %143 = arith.mulf %140, %126 : vector<8x32xf32>
    %144 = arith.mulf %139, %141 : vector<8x32xf32>
    %145 = arith.addf %143, %144 : vector<8x32xf32>
    %146 = math.tanh %145 : vector<8x32xf32>
    %147 = arith.mulf %142, %146 : vector<8x32xf32>
    %148 = vector.extract_strided_slice %6 {offsets = [56, 0], sizes = [8, 128], strides = [1, 1]} : vector<64x128xf32> to vector<8x128xf32>
    %cst_23 = arith.constant dense<0.000000e+00> : vector<8x128xf32>
    %149 = tpu.matmul %147, %0, %cst_23 {dimension_numbers = #tpu.dot_dimension_numbers<[1], [0], [0], [1], [0, 0, 1, 1], [], []>} : vector<8x32xf32>, vector<32x128xf32>, vector<8x128xf32> -> vector<8x128xf32>
    %150 = arith.addf %148, %149 : vector<8x128xf32>
    %151 = arith.negf %150 : vector<8x128xf32>
    %152 = math.exp %151 : vector<8x128xf32>
    %cst_24 = arith.constant 1.000000e+00 : f32
    %153 = vector.broadcast %cst_24 : f32 to vector<8x128xf32>
    %154 = arith.addf %153, %152 : vector<8x128xf32>
    %155 = arith.divf %153, %154 : vector<8x128xf32>
    %156 = math.tanh %150 : vector<8x128xf32>
    %157 = arith.select %12, %156, %155 : vector<8x128xi1>, vector<8x128xf32>
    %158 = vector.extract_strided_slice %157 {offsets = [0, 0], sizes = [8, 32], strides = [1, 1]} : vector<8x128xf32> to vector<8x32xf32>
    %159 = vector.extract_strided_slice %157 {offsets = [0, 32], sizes = [8, 32], strides = [1, 1]} : vector<8x128xf32> to vector<8x32xf32>
    %160 = vector.extract_strided_slice %157 {offsets = [0, 64], sizes = [8, 32], strides = [1, 1]} : vector<8x128xf32> to vector<8x32xf32>
    %161 = vector.extract_strided_slice %157 {offsets = [0, 96], sizes = [8, 32], strides = [1, 1]} : vector<8x128xf32> to vector<8x32xf32>
    %162 = arith.mulf %159, %145 : vector<8x32xf32>
    %163 = arith.mulf %158, %160 : vector<8x32xf32>
    %164 = arith.addf %162, %163 : vector<8x32xf32>
    %165 = math.tanh %164 : vector<8x32xf32>
    %166 = arith.mulf %161, %165 : vector<8x32xf32>
    %c0_25 = arith.constant 0 : index
    %c0_26 = arith.constant 0 : index
    %167 = vector.load %arg4[%c0_25, %c0_26] : memref<32x1xf32, #tpu.memory_space<vmem>>, vector<32x1xf32>
    %cst_27 = arith.constant dense<0.000000e+00> : vector<8x1xf32>
    %168 = tpu.matmul %166, %167, %cst_27 {dimension_numbers = #tpu.dot_dimension_numbers<[1], [0], [0], [1], [0, 0, 1, 1], [], []>} : vector<8x32xf32>, vector<32x1xf32>, vector<8x1xf32> -> vector<8x1xf32>
    %c0_28 = arith.constant 0 : index
    %c0_29 = arith.constant 0 : index
    %169 = vector.load %arg5[%c0_28, %c0_29] : memref<1x1xf32, #tpu.memory_space<vmem>>, vector<1x1xf32>
    %170 = vector.broadcast %169 : vector<1x1xf32> to vector<8x1xf32>
    %171 = arith.addf %168, %170 : vector<8x1xf32>
    %c0_30 = arith.constant 0 : index
    %c0_31 = arith.constant 0 : index
    %172 = vector.load %arg6[%c0_30, %c0_31] : memref<8x1xf32, #tpu.memory_space<vmem>>, vector<8x1xf32>
    tpu.vector_store %arg6[%c0_30, %c0_31], %171 {strides = array<i32>} : memref<8x1xf32, #tpu.memory_space<vmem>>, vector<8x1xf32>,
    return
  }
}

</mosaic_0001>

<llo_original>
// kernel: stock_model_forward.1
$region0: #{stock_model_forward.1}
  #allocation0 [shape = 'u32[]', space=smem, size = 0x4, offset = 0x4, fixed_abs, tag = 'smem constant byte address 0x4 - core index']
  #allocation1 [shape = 'u32[72,128]{1,0:T(1,128)}', space=vmem, size = 0x9000, scoped, tag = 'internal scratch']
  #allocation2 [shape = 'f32[1,1]{1,0:T(1,128)S(1)}', space=vmem, size = 0x200, scoped, tag = 'scoped memory for stock_model_forward.1']
  %s0 = inlined_call_operand.vmem [shape: f32[64,4], index: 0, kind: input, shape index: {}]
  %s1 = inlined_call_operand.vmem [shape: f32[4,128], index: 1, kind: input, shape index: {}]
  %s2 = inlined_call_operand.vmem [shape: f32[32,128], index: 2, kind: input, shape index: {}]
  %s3 = inlined_call_operand.vmem [shape: f32[1,128], index: 3, kind: input, shape index: {}]
  %s4 = inlined_call_operand.vmem [shape: f32[32,1], index: 4, kind: input, shape index: {}]
  %s5 = inlined_call_operand.<no memory space> [shape: f32[1,1], index: 5, kind: input, shape index: {}]
  %s6 = inlined_call_operand.vmem [shape: f32[8,1], index: 6, kind: output, shape index: {}]
  %s7 = sld [smem:[#allocation0]]
  $region34: #{stock_model_forward.1} parent=0
    _
  %s9 = ssub.s32 1, %s7
  %s10 = scalar_select 0, %s9, %s7
  %v11 = vstv %s5
  %12 = vst [vmem:[#allocation2] sm:$0x1] %v11
  // Predicated region
  $region2: #{stock_model_forward.1} parent=0 // pred_check
    _
  $region3: #{stock_model_forward.1} parent=0 // pred_check_branch
    %14 = sbr.rel (0) target = $region5
  $region4: #{stock_model_forward.1} parent=0 // pred_region
    _
  $region5: #{stock_model_forward.1} parent=0 // pred_fallthru
    _
  // Predicated region
  $region6: #{stock_model_forward.1} parent=0 // pred_check
    _
  $region7: #{stock_model_forward.1} parent=0 // pred_check_branch
    %16 = sbr.rel (0) target = $region9
  $region8: #{stock_model_forward.1} parent=0 // pred_region
    _
  $region9: #{stock_model_forward.1} parent=0 // pred_fallthru
    _
  // Predicated region
  $region10: #{stock_model_forward.1} parent=0 // pred_check
    _
  $region11: #{stock_model_forward.1} parent=0 // pred_check_branch
    %18 = sbr.rel (0) target = $region13
  $region12: #{stock_model_forward.1} parent=0 // pred_region
    _
  $region13: #{stock_model_forward.1} parent=0 // pred_fallthru
    _
  // Predicated region
  $region14: #{stock_model_forward.1} parent=0 // pred_check
    _
  $region15: #{stock_model_forward.1} parent=0 // pred_check_branch
    %20 = sbr.rel (0) target = $region17
  $region16: #{stock_model_forward.1} parent=0 // pred_region
    _
  $region17: #{stock_model_forward.1} parent=0 // pred_fallthru
    _
  // Predicated region
  $region18: #{stock_model_forward.1} parent=0 // pred_check
    _
  $region19: #{stock_model_forward.1} parent=0 // pred_check_branch
    %22 = sbr.rel (0) target = $region21
  $region20: #{stock_model_forward.1} parent=0 // pred_region
    _
  $region21: #{stock_model_forward.1} parent=0 // pred_fallthru
    _
  // Predicated region
  $region22: #{stock_model_forward.1} parent=0 // pred_check
    _
  $region23: #{stock_model_forward.1} parent=0 // pred_check_branch
    %24 = sbr.rel (0) target = $region25
  $region24: #{stock_model_forward.1} parent=0 // pred_region
    _
  $region25: #{stock_model_forward.1} parent=0 // pred_fallthru
    _
  %v25 = vld [vmem:[%s2] sm:$0xff]
  %v26 = vld [vmem:[%s2 + $0x8] sm:$0xff]
  %v27 = vld [vmem:[%s2 + $0x10] sm:$0xff]
  %v28 = vld [vmem:[%s2 + $0x18] sm:$0xff]
  %v29 = vld [vmem:[%s0] sm:$0xff]
  %v30 = vld [vmem:[%s0 + $0x8] sm:$0xff]
  %v31 = vld [vmem:[%s0 + $0x10] sm:$0xff]
  %v32 = vld [vmem:[%s0 + $0x18] sm:$0xff]
  %v33 = vld [vmem:[%s0 + $0x20] sm:$0xff]
  %v34 = vld [vmem:[%s0 + $0x28] sm:$0xff]
  %v35 = vld [vmem:[%s0 + $0x30] sm:$0xff]
  %v36 = vld [vmem:[%s0 + $0x38] sm:$0xff]
  %v37 = vld [vmem:[%s1] sm:$0xf]
  %v38 = vld [vmem:[%s3] sm:$0x1]
  %v40 = vperm.slane %v38, 0
  %vm42 = vcmask 31744
  %v44 = vsel %vm42, %v29, 0
  %v47 = vsel %vm42, %v30, 0
  %v50 = vsel %vm42, %v31, 0
  %v53 = vsel %vm42, %v32, 0
  %v56 = vsel %vm42, %v33, 0
  %v59 = vsel %vm42, %v34, 0
  %v62 = vsel %vm42, %v35, 0
  %v65 = vsel %vm42, %v36, 0
  %vm67 = vcmask 1043456
  %v69 = vsel %vm67, %v37, 0
  %71 = vmatpush.msra.mxu0 0.0
  %72 = vmatpush.msra.mxu0 0.0
  %73 = vmatpush.msra.mxu0 0.0
  %74 = vmatpush.msra.mxu0 0.0
  %75 = vmatpush.msra.mxu0 0.0
  %76 = vmatpush.msra.mxu0 0.0
  %77 = vmatpush.msra.mxu0 0.0
  %78 = vmatpush.msra.mxu0 0.0
  %79 = vmatpush.msra.mxu0 0.0
  %80 = vmatpush.msra.mxu0 0.0
  %81 = vmatpush.msra.mxu0 0.0
  %82 = vmatpush.msra.mxu0 0.0
  %83 = vmatpush.msra.mxu0 0.0
  %84 = vmatpush.msra.mxu0 0.0
  %85 = vmatpush.msra.mxu0 0.0
  %86 = vmatpush.msra.mxu0 %v69
  %87 = vmatmul.f32.gmra.mxu0 %v44
  %v88 = vpop.f32.mrf.mxu0
  %v89 = vadd.f32 %v40, %v88
  %90 = vmatmul.f32.gmra.mxu0 %v47
  %v91 = vpop.f32.mrf.mxu0
  %v92 = vadd.f32 %v40, %v91
  %93 = vmatmul.f32.gmra.mxu0 %v50
  %v94 = vpop.f32.mrf.mxu0
  %v95 = vadd.f32 %v40, %v94
  %96 = vmatmul.f32.gmra.mxu0 %v53
  %v97 = vpop.f32.mrf.mxu0
  %v98 = vadd.f32 %v40, %v97
  %99 = vmatmul.f32.gmra.mxu0 %v56
  %v100 = vpop.f32.mrf.mxu0
  %v101 = vadd.f32 %v40, %v100
  %102 = vmatmul.f32.gmra.mxu0 %v59
  %v103 = vpop.f32.mrf.mxu0
  %v104 = vadd.f32 %v40, %v103
  %105 = vmatmul.f32.gmra.mxu0 %v62
  %v106 = vpop.f32.mrf.mxu0
  %v107 = vadd.f32 %v40, %v106
  %108 = vmatmul.f32.gmra.mxu0 %v65
  %v109 = vpop.f32.mrf.mxu0
  %v110 = vadd.f32 %v40, %v109
  %111 = vdwg.mxu0
  %v112 = vlaneseq
  %v113 = vand.u32 %v112, 127
  %vm114 = vcmp.ge.s32.totalorder %v113, 64
  %vm115 = vcmp.lt.s32.totalorder %v113, 96
  %vm116 = vmand %vm114, %vm115
  %vm117 = vcmask 261120
  %v119 = vsel %vm117, 0.0, 0
  %121 = vmatpush.msra.mxu0 0.0
  %122 = vmatpush.msra.mxu0 0.0
  %123 = vmatpush.msra.mxu0 0.0
  %124 = vmatpush.msra.mxu0 0.0
  %125 = vmatpush.msra.mxu0 0.0
  %126 = vmatpush.msra.mxu0 0.0
  %127 = vmatpush.msra.mxu0 0.0
  %128 = vmatpush.msra.mxu0 0.0
  %129 = vmatpush.msra.mxu0 0.0
  %130 = vmatpush.msra.mxu0 0.0
  %131 = vmatpush.msra.mxu0 0.0
  %132 = vmatpush.msra.mxu0 0.0
  %133 = vmatpush.msra.mxu0 %v28
  %134 = vmatpush.msra.mxu0 %v27
  %135 = vmatpush.msra.mxu0 %v26
  %136 = vmatpush.msra.mxu0 %v25
  %137 = vmatmul.f32.gmra.mxu0 %v119
  %v138 = vpop.f32.mrf.mxu0
  %v139 = vadd.f32 0.0, %v138
  %140 = vdwg.mxu0
  %v141 = vadd.f32 %v89, %v139
  %v142 = vxor.u32 %v141, 2147483648
  %v143 = vmul.f32 %v142, 1.442695
  %v144 = vpow.pop %v143
  %v145 = vadd.f32 %v144, 1.0
  %v146 = vrcp.pop %v145
  %v147 = vmul.f32 %v145, %v146
  %v148 = vsub.f32 1.0, %v147
  %v149 = vmul.f32 %v146, %v148
  %v150 = vadd.f32 %v146, %v149
  %vm151 = vweird.f32 %v145
  %vm152 = vweird.f32 %v146
  %vm153 = vmor %vm151, %vm152
  %v154 = vsel %vm153, %v146, %v150
  %v155 = vand.u32 2147483647, %v145
  %vm156 = vcmp.eq.f32.partialorder %v155, 8.507059e+37
  %v157 = vand.u32 %v145, 2147483648
  %v158 = vor.u32 1.1754944e-38, %v157
  %v159 = vsel %vm156, %v158, %v154
  %v160 = vmul.f32 1.0, %v159
  %v161 = vtanh.pop %v141
  %v162 = vsel %vm116, %v161, %v160
  %v163 = vmul.f32 %v162, 0.0
  %165 = vrot.lane.b32.xlu0 %v162, 64
  %v166 = vpop.permute.xlu0 %165
  %v168 = vmul.f32 %v162, %v166
  %170 = vrot.lane.b32.xlu0 %v168, 32
  %v171 = vpop.permute.xlu0 %170
  %v173 = vadd.f32 %v163, %v171
  %v174 = vtanh.pop %v173
  %176 = vrot.lane.b32.xlu0 %v174, 64
  %v177 = vpop.permute.xlu0 %176
  %v179 = vmul.f32 %v162, %v177
  %181 = vrot.lane.b32.xlu0 %v179, 32
  %v182 = vpop.permute.xlu0 %181
  %v183 = vsel %vm117, %v182, 0
  %185 = vmatpush.msra.mxu0 0.0
  %186 = vmatpush.msra.mxu0 0.0
  %187 = vmatpush.msra.mxu0 0.0
  %188 = vmatpush.msra.mxu0 0.0
  %189 = vmatpush.msra.mxu0 0.0
  %190 = vmatpush.msra.mxu0 0.0
  %191 = vmatpush.msra.mxu0 0.0
  %192 = vmatpush.msra.mxu0 0.0
  %193 = vmatpush.msra.mxu0 0.0
  %194 = vmatpush.msra.mxu0 0.0
  %195 = vmatpush.msra.mxu0 0.0
  %196 = vmatpush.msra.mxu0 0.0
  %197 = vmatpush.msra.mxu0 %v28
  %198 = vmatpush.msra.mxu0 %v27
  %199 = vmatpush.msra.mxu0 %v26
  %200 = vmatpush.msra.mxu0 %v25
  %201 = vmatmul.f32.gmra.mxu0 %v183
  %v202 = vpop.f32.mrf.mxu0
  %v203 = vadd.f32 0.0, %v202
  %204 = vdwg.mxu0
  %v205 = vadd.f32 %v92, %v203
  %v206 = vxor.u32 %v205, 2147483648
  %v207 = vmul.f32 %v206, 1.442695
  %v208 = vpow.pop %v207
  %v209 = vadd.f32 %v208, 1.0
  %v210 = vrcp.pop %v209
  %v211 = vmul.f32 %v209, %v210
  %v212 = vsub.f32 1.0, %v211
  %v213 = vmul.f32 %v210, %v212
  %v214 = vadd.f32 %v210, %v213
  %vm215 = vweird.f32 %v209
  %vm216 = vweird.f32 %v210
  %vm217 = vmor %vm215, %vm216
  %v218 = vsel %vm217, %v210, %v214
  %v219 = vand.u32 2147483647, %v209
  %vm220 = vcmp.eq.f32.partialorder %v219, 8.507059e+37
  %v221 = vand.u32 %v209, 2147483648
  %v222 = vor.u32 1.1754944e-38, %v221
  %v223 = vsel %vm220, %v222, %v218
  %v224 = vmul.f32 1.0, %v223
  %v225 = vtanh.pop %v205
  %v226 = vsel %vm116, %v225, %v224
  %v227 = vmul.f32 %v226, %v173
  %229 = vrot.lane.b32.xlu0 %v226, 64
  %v230 = vpop.permute.xlu0 %229
  %v232 = vmul.f32 %v226, %v230
  %234 = vrot.lane.b32.xlu0 %v232, 32
  %v235 = vpop.permute.xlu0 %234
  %v237 = vadd.f32 %v227, %v235
  %v238 = vtanh.pop %v237
  %240 = vrot.lane.b32.xlu0 %v238, 64
  %v241 = vpop.permute.xlu0 %240
  %v243 = vmul.f32 %v226, %v241
  %245 = vrot.lane.b32.xlu0 %v243, 32
  %v246 = vpop.permute.xlu0 %245
  %v247 = vsel %vm117, %v246, 0
  %249 = vmatpush.msra.mxu0 0.0
  %250 = vmatpush.msra.mxu0 0.0
  %251 = vmatpush.msra.mxu0 0.0
  %252 = vmatpush.msra.mxu0 0.0
  %253 = vmatpush.msra.mxu0 0.0
  %254 = vmatpush.msra.mxu0 0.0
  %255 = vmatpush.msra.mxu0 0.0
  %256 = vmatpush.msra.mxu0 0.0
  %257 = vmatpush.msra.mxu0 0.0
  %258 = vmatpush.msra.mxu0 0.0
  %259 = vmatpush.msra.mxu0 0.0
  %260 = vmatpush.msra.mxu0 0.0
  %261 = vmatpush.msra.mxu0 %v28
  %262 = vmatpush.msra.mxu0 %v27
  %263 = vmatpush.msra.mxu0 %v26
  %264 = vmatpush.msra.mxu0 %v25
  %265 = vmatmul.f32.gmra.mxu0 %v247
  %v266 = vpop.f32.mrf.mxu0
  %v267 = vadd.f32 0.0, %v266
  %268 = vdwg.mxu0
  %v269 = vadd.f32 %v95, %v267
  %v270 = vxor.u32 %v269, 2147483648
  %v271 = vmul.f32 %v270, 1.442695
  %v272 = vpow.pop %v271
  %v273 = vadd.f32 %v272, 1.0
  %v274 = vrcp.pop %v273
  %v275 = vmul.f32 %v273, %v274
  %v276 = vsub.f32 1.0, %v275
  %v277 = vmul.f32 %v274, %v276
  %v278 = vadd.f32 %v274, %v277
  %vm279 = vweird.f32 %v273
  %vm280 = vweird.f32 %v274
  %vm281 = vmor %vm279, %vm280
  %v282 = vsel %vm281, %v274, %v278
  %v283 = vand.u32 2147483647, %v273
  %vm284 = vcmp.eq.f32.partialorder %v283, 8.507059e+37
  %v285 = vand.u32 %v273, 2147483648
  %v286 = vor.u32 1.1754944e-38, %v285
  %v287 = vsel %vm284, %v286, %v282
  %v288 = vmul.f32 1.0, %v287
  %v289 = vtanh.pop %v269
  %v290 = vsel %vm116, %v289, %v288
  %v291 = vmul.f32 %v290, %v237
  %293 = vrot.lane.b32.xlu0 %v290, 64
  %v294 = vpop.permute.xlu0 %293
  %v296 = vmul.f32 %v290, %v294
  %298 = vrot.lane.b32.xlu0 %v296, 32
  %v299 = vpop.permute.xlu0 %298
  %v301 = vadd.f32 %v291, %v299
  %v302 = vtanh.pop %v301
  %304 = vrot.lane.b32.xlu0 %v302, 64
  %v305 = vpop.permute.xlu0 %304
  %v307 = vmul.f32 %v290, %v305
  %309 = vrot.lane.b32.xlu0 %v307, 32
  %v310 = vpop.permute.xlu0 %309
  %v311 = vsel %vm117, %v310, 0
  %313 = vmatpush.msra.mxu0 0.0
  %314 = vmatpush.msra.mxu0 0.0
  %315 = vmatpush.msra.mxu0 0.0
  %316 = vmatpush.msra.mxu0 0.0
  %317 = vmatpush.msra.mxu0 0.0
  %318 = vmatpush.msra.mxu0 0.0
  %319 = vmatpush.msra.mxu0 0.0
  %320 = vmatpush.msra.mxu0 0.0
  %321 = vmatpush.msra.mxu0 0.0
  %322 = vmatpush.msra.mxu0 0.0
  %323 = vmatpush.msra.mxu0 0.0
  %324 = vmatpush.msra.mxu0 0.0
  %325 = vmatpush.msra.mxu0 %v28
  %326 = vmatpush.msra.mxu0 %v27
  %327 = vmatpush.msra.mxu0 %v26
  %328 = vmatpush.msra.mxu0 %v25
  %329 = vmatmul.f32.gmra.mxu0 %v311
  %v330 = vpop.f32.mrf.mxu0
  %v331 = vadd.f32 0.0, %v330
  %332 = vdwg.mxu0
  %v333 = vadd.f32 %v98, %v331
  %v334 = vxor.u32 %v333, 2147483648
  %v335 = vmul.f32 %v334, 1.442695
  %v336 = vpow.pop %v335
  %v337 = vadd.f32 %v336, 1.0
  %v338 = vrcp.pop %v337
  %v339 = vmul.f32 %v337, %v338
  %v340 = vsub.f32 1.0, %v339
  %v341 = vmul.f32 %v338, %v340
  %v342 = vadd.f32 %v338, %v341
  %vm343 = vweird.f32 %v337
  %vm344 = vweird.f32 %v338
  %vm345 = vmor %vm343, %vm344
  %v346 = vsel %vm345, %v338, %v342
  %v347 = vand.u32 2147483647, %v337
  %vm348 = vcmp.eq.f32.partialorder %v347, 8.507059e+37
  %v349 = vand.u32 %v337, 2147483648
  %v350 = vor.u32 1.1754944e-38, %v349
  %v351 = vsel %vm348, %v350, %v346
  %v352 = vmul.f32 1.0, %v351
  %v353 = vtanh.pop %v333
  %v354 = vsel %vm116, %v353, %v352
  %v355 = vmul.f32 %v354, %v301
  %357 = vrot.lane.b32.xlu0 %v354, 64
  %v358 = vpop.permute.xlu0 %357
  %v360 = vmul.f32 %v354, %v358
  %362 = vrot.lane.b32.xlu0 %v360, 32
  %v363 = vpop.permute.xlu0 %362
  %v365 = vadd.f32 %v355, %v363
  %v366 = vtanh.pop %v365
  %368 = vrot.lane.b32.xlu0 %v366, 64
  %v369 = vpop.permute.xlu0 %368
  %v371 = vmul.f32 %v354, %v369
  %373 = vrot.lane.b32.xlu0 %v371, 32
  %v374 = vpop.permute.xlu0 %373
  %v375 = vsel %vm117, %v374, 0
  %377 = vmatpush.msra.mxu0 0.0
  %378 = vmatpush.msra.mxu0 0.0
  %379 = vmatpush.msra.mxu0 0.0
  %380 = vmatpush.msra.mxu0 0.0
  %381 = vmatpush.msra.mxu0 0.0
  %382 = vmatpush.msra.mxu0 0.0
  %383 = vmatpush.msra.mxu0 0.0
  %384 = vmatpush.msra.mxu0 0.0
  %385 = vmatpush.msra.mxu0 0.0
  %386 = vmatpush.msra.mxu0 0.0
  %387 = vmatpush.msra.mxu0 0.0
  %388 = vmatpush.msra.mxu0 0.0
  %389 = vmatpush.msra.mxu0 %v28
  %390 = vmatpush.msra.mxu0 %v27
  %391 = vmatpush.msra.mxu0 %v26
  %392 = vmatpush.msra.mxu0 %v25
  %393 = vmatmul.f32.gmra.mxu0 %v375
  %v394 = vpop.f32.mrf.mxu0
  %v395 = vadd.f32 0.0, %v394
  %396 = vdwg.mxu0
  %v397 = vadd.f32 %v101, %v395
  %v398 = vxor.u32 %v397, 2147483648
  %v399 = vmul.f32 %v398, 1.442695
  %v400 = vpow.pop %v399
  %v401 = vadd.f32 %v400, 1.0
  %v402 = vrcp.pop %v401
  %v403 = vmul.f32 %v401, %v402
  %v404 = vsub.f32 1.0, %v403
  %v405 = vmul.f32 %v402, %v404
  %v406 = vadd.f32 %v402, %v405
  %vm407 = vweird.f32 %v401
  %vm408 = vweird.f32 %v402
  %vm409 = vmor %vm407, %vm408
  %v410 = vsel %vm409, %v402, %v406
  %v411 = vand.u32 2147483647, %v401
  %vm412 = vcmp.eq.f32.partialorder %v411, 8.507059e+37
  %v413 = vand.u32 %v401, 2147483648
  %v414 = vor.u32 1.1754944e-38, %v413
  %v415 = vsel %vm412, %v414, %v410
  %v416 = vmul.f32 1.0, %v415
  %v417 = vtanh.pop %v397
  %v418 = vsel %vm116, %v417, %v416
  %v419 = vmul.f32 %v418, %v365
  %421 = vrot.lane.b32.xlu0 %v418, 64
  %v422 = vpop.permute.xlu0 %421
  %v424 = vmul.f32 %v418, %v422
  %426 = vrot.lane.b32.xlu0 %v424, 32
  %v427 = vpop.permute.xlu0 %426
  %v429 = vadd.f32 %v419, %v427
  %v430 = vtanh.pop %v429
  %432 = vrot.lane.b32.xlu0 %v430, 64
  %v433 = vpop.permute.xlu0 %432
  %v435 = vmul.f32 %v418, %v433
  %437 = vrot.lane.b32.xlu0 %v435, 32
  %v438 = vpop.permute.xlu0 %437
  %v439 = vsel %vm117, %v438, 0
  %441 = vmatpush.msra.mxu0 0.0
  %442 = vmatpush.msra.mxu0 0.0
  %443 = vmatpush.msra.mxu0 0.0
  %444 = vmatpush.msra.mxu0 0.0
  %445 = vmatpush.msra.mxu0 0.0
  %446 = vmatpush.msra.mxu0 0.0
  %447 = vmatpush.msra.mxu0 0.0
  %448 = vmatpush.msra.mxu0 0.0
  %449 = vmatpush.msra.mxu0 0.0
  %450 = vmatpush.msra.mxu0 0.0
  %451 = vmatpush.msra.mxu0 0.0
  %452 = vmatpush.msra.mxu0 0.0
  %453 = vmatpush.msra.mxu0 %v28
  %454 = vmatpush.msra.mxu0 %v27
  %455 = vmatpush.msra.mxu0 %v26
  %456 = vmatpush.msra.mxu0 %v25
  %457 = vmatmul.f32.gmra.mxu0 %v439
  %v458 = vpop.f32.mrf.mxu0
  %v459 = vadd.f32 0.0, %v458
  %460 = vdwg.mxu0
  %v461 = vadd.f32 %v104, %v459
  %v462 = vxor.u32 %v461, 2147483648
  %v463 = vmul.f32 %v462, 1.442695
  %v464 = vpow.pop %v463
  %v465 = vadd.f32 %v464, 1.0
  %v466 = vrcp.pop %v465
  %v467 = vmul.f32 %v465, %v466
  %v468 = vsub.f32 1.0, %v467
  %v469 = vmul.f32 %v466, %v468
  %v470 = vadd.f32 %v466, %v469
  %vm471 = vweird.f32 %v465
  %vm472 = vweird.f32 %v466
  %vm473 = vmor %vm471, %vm472
  %v474 = vsel %vm473, %v466, %v470
  %v475 = vand.u32 2147483647, %v465
  %vm476 = vcmp.eq.f32.partialorder %v475, 8.507059e+37
  %v477 = vand.u32 %v465, 2147483648
  %v478 = vor.u32 1.1754944e-38, %v477
  %v479 = vsel %vm476, %v478, %v474
  %v480 = vmul.f32 1.0, %v479
  %v481 = vtanh.pop %v461
  %v482 = vsel %vm116, %v481, %v480
  %v483 = vmul.f32 %v482, %v429
  %485 = vrot.lane.b32.xlu0 %v482, 64
  %v486 = vpop.permute.xlu0 %485
  %v488 = vmul.f32 %v482, %v486
  %490 = vrot.lane.b32.xlu0 %v488, 32
  %v491 = vpop.permute.xlu0 %490
  %v493 = vadd.f32 %v483, %v491
  %v494 = vtanh.pop %v493
  %496 = vrot.lane.b32.xlu0 %v494, 64
  %v497 = vpop.permute.xlu0 %496
  %v499 = vmul.f32 %v482, %v497
  %501 = vrot.lane.b32.xlu0 %v499, 32
  %v502 = vpop.permute.xlu0 %501
  %v503 = vsel %vm117, %v502, 0
  %505 = vmatpush.msra.mxu0 0.0
  %506 = vmatpush.msra.mxu0 0.0
  %507 = vmatpush.msra.mxu0 0.0
  %508 = vmatpush.msra.mxu0 0.0
  %509 = vmatpush.msra.mxu0 0.0
  %510 = vmatpush.msra.mxu0 0.0
  %511 = vmatpush.msra.mxu0 0.0
  %512 = vmatpush.msra.mxu0 0.0
  %513 = vmatpush.msra.mxu0 0.0
  %514 = vmatpush.msra.mxu0 0.0
  %515 = vmatpush.msra.mxu0 0.0
  %516 = vmatpush.msra.mxu0 0.0
  %517 = vmatpush.msra.mxu0 %v28
  %518 = vmatpush.msra.mxu0 %v27
  %519 = vmatpush.msra.mxu0 %v26
  %520 = vmatpush.msra.mxu0 %v25
  %521 = vmatmul.f32.gmra.mxu0 %v503
  %v522 = vpop.f32.mrf.mxu0
  %v523 = vadd.f32 0.0, %v522
  %524 = vdwg.mxu0
  %v525 = vadd.f32 %v107, %v523
  %v526 = vxor.u32 %v525, 2147483648
  %v527 = vmul.f32 %v526, 1.442695
  %v528 = vpow.pop %v527
  %v529 = vadd.f32 %v528, 1.0
  %v530 = vrcp.pop %v529
  %v531 = vmul.f32 %v529, %v530
  %v532 = vsub.f32 1.0, %v531
  %v533 = vmul.f32 %v530, %v532
  %v534 = vadd.f32 %v530, %v533
  %vm535 = vweird.f32 %v529
  %vm536 = vweird.f32 %v530
  %vm537 = vmor %vm535, %vm536
  %v538 = vsel %vm537, %v530, %v534
  %v539 = vand.u32 2147483647, %v529
  %vm540 = vcmp.eq.f32.partialorder %v539, 8.507059e+37
  %v541 = vand.u32 %v529, 2147483648
  %v542 = vor.u32 1.1754944e-38, %v541
  %v543 = vsel %vm540, %v542, %v538
  %v544 = vmul.f32 1.0, %v543
  %v545 = vtanh.pop %v525
  %v546 = vsel %vm116, %v545, %v544
  %v547 = vmul.f32 %v546, %v493
  %549 = vrot.lane.b32.xlu0 %v546, 64
  %v550 = vpop.permute.xlu0 %549
  %v552 = vmul.f32 %v546, %v550
  %554 = vrot.lane.b32.xlu0 %v552, 32
  %v555 = vpop.permute.xlu0 %554
  %v557 = vadd.f32 %v547, %v555
  %v558 = vtanh.pop %v557
  %560 = vrot.lane.b32.xlu0 %v558, 64
  %v561 = vpop.permute.xlu0 %560
  %v563 = vmul.f32 %v546, %v561
  %565 = vrot.lane.b32.xlu0 %v563, 32
  %v566 = vpop.permute.xlu0 %565
  %v567 = vsel %vm117, %v566, 0
  %569 = vmatpush.msra.mxu0 0.0
  %570 = vmatpush.msra.mxu0 0.0
  %571 = vmatpush.msra.mxu0 0.0
  %572 = vmatpush.msra.mxu0 0.0
  %573 = vmatpush.msra.mxu0 0.0
  %574 = vmatpush.msra.mxu0 0.0
  %575 = vmatpush.msra.mxu0 0.0
  %576 = vmatpush.msra.mxu0 0.0
  %577 = vmatpush.msra.mxu0 0.0
  %578 = vmatpush.msra.mxu0 0.0
  %579 = vmatpush.msra.mxu0 0.0
  %580 = vmatpush.msra.mxu0 0.0
  %581 = vmatpush.msra.mxu0 %v28
  %582 = vmatpush.msra.mxu0 %v27
  %583 = vmatpush.msra.mxu0 %v26
  %584 = vmatpush.msra.mxu0 %v25
  %585 = vmatmul.f32.gmra.mxu0 %v567
  %v586 = vpop.f32.mrf.mxu0
  %v587 = vadd.f32 0.0, %v586
  %588 = vdwg.mxu0
  %v589 = vadd.f32 %v110, %v587
  %v590 = vxor.u32 %v589, 2147483648
  %v591 = vmul.f32 %v590, 1.442695
  %v592 = vpow.pop %v591
  %v593 = vadd.f32 %v592, 1.0
  %v594 = vrcp.pop %v593
  %v595 = vmul.f32 %v593, %v594
  %v596 = vsub.f32 1.0, %v595
  %v597 = vmul.f32 %v594, %v596
  %v598 = vadd.f32 %v594, %v597
  %vm599 = vweird.f32 %v593
  %vm600 = vweird.f32 %v594
  %vm601 = vmor %vm599, %vm600
  %v602 = vsel %vm601, %v594, %v598
  %v603 = vand.u32 2147483647, %v593
  %vm604 = vcmp.eq.f32.partialorder %v603, 8.507059e+37
  %v605 = vand.u32 %v593, 2147483648
  %v606 = vor.u32 1.1754944e-38, %v605
  %v607 = vsel %vm604, %v606, %v602
  %v608 = vmul.f32 1.0, %v607
  %v609 = vtanh.pop %v589
  %v610 = vsel %vm116, %v609, %v608
  %v611 = vmul.f32 %v610, %v557
  %613 = vrot.lane.b32.xlu0 %v610, 64
  %v614 = vpop.permute.xlu0 %613
  %v616 = vmul.f32 %v610, %v614
  %618 = vrot.lane.b32.xlu0 %v616, 32
  %v619 = vpop.permute.xlu0 %618
  %v621 = vadd.f32 %v611, %v619
  %v622 = vtanh.pop %v621
  %624 = vrot.lane.b32.xlu0 %v622, 64
  %v625 = vpop.permute.xlu0 %624
  %v627 = vmul.f32 %v610, %v625
  %v628 = vld [vmem:[%s4] sm:$0xff]
  %v629 = vld [vmem:[%s4 + $0x8] sm:$0xff]
  %v630 = vld [vmem:[%s4 + $0x10] sm:$0xff]
  %v631 = vld [vmem:[%s4 + $0x18] sm:$0xff]
  %v632 = vld [vmem:[#allocation2] sm:$0x1]
  %v634 = vperm.slane %v632, 0
  %637 = vrot.lane.b32.xlu0 %v627, 32
  %v638 = vpop.permute.xlu0 %637
  %v639 = vsel %vm117, %v638, 0
  %641 = vmatpush.msra.mxu0 0.0
  %642 = vmatpush.msra.mxu0 0.0
  %643 = vmatpush.msra.mxu0 0.0
  %644 = vmatpush.msra.mxu0 0.0
  %645 = vmatpush.msra.mxu0 0.0
  %646 = vmatpush.msra.mxu0 0.0
  %647 = vmatpush.msra.mxu0 0.0
  %648 = vmatpush.msra.mxu0 0.0
  %649 = vmatpush.msra.mxu0 0.0
  %650 = vmatpush.msra.mxu0 0.0
  %651 = vmatpush.msra.mxu0 0.0
  %652 = vmatpush.msra.mxu0 0.0
  %653 = vmatpush.msra.mxu0 %v631
  %654 = vmatpush.msra.mxu0 %v630
  %655 = vmatpush.msra.mxu0 %v629
  %656 = vmatpush.msra.mxu0 %v628
  %657 = vmatmul.f32.gmra.mxu0 %v639
  %v658 = vpop.f32.mrf.mxu0
  %v659 = vadd.f32 %v634, %v658
  %660 = vdwg.mxu0
  %vm661 = vcmask 7168
  %662 = vst.msk [vmem:[%s6] sm:$0xff] %vm661, %v659
  // Predicated region
  $region26: #{stock_model_forward.1} parent=0 // pred_check
    _
  $region27: #{stock_model_forward.1} parent=0 // pred_check_branch
    %664 = sbr.rel (0) target = $region29
  $region28: #{stock_model_forward.1} parent=0 // pred_region
    _
  $region29: #{stock_model_forward.1} parent=0 // pred_fallthru
    _
  // Predicated region
  $region30: #{stock_model_forward.1} parent=0 // pred_check
    _
  $region31: #{stock_model_forward.1} parent=0 // pred_check_branch
    %666 = sbr.rel (0) target = $region33
  $region32: #{stock_model_forward.1} parent=0 // pred_region
    _
  $region33: #{stock_model_forward.1} parent=0 // pred_fallthru
    _

</llo_original>
